<compile_context>
chip_gen: v6e
topology: v6e:2x2x1
jax: 0.10.0
libtpu: 0.0.40
codegen_flags: <defaults>
</compile_context>

<pallas_src>
import jax
import jax.numpy as jnp
from jax.experimental import pallas as pl
from jax.experimental.pallas import tpu as pltpu


# --------------------------------------------------------------------------- #
# Kernels
# --------------------------------------------------------------------------- #
def _ffw_kernel_single(x_ref, w1_ref, b1_ref, w2_ref, b2_ref, o_ref):
    """Whole hidden dim resident (K == 1): single fused pass, no accumulator."""
    xb = x_ref[...].astype(jnp.bfloat16)
    h = jnp.dot(xb, w1_ref[...], preferred_element_type=jnp.float32)
    h = jnp.maximum(h + b1_ref[...], 0.0)
    o_ref[...] = (jnp.dot(h.astype(w2_ref.dtype), w2_ref[...],
                          preferred_element_type=jnp.float32)
                  + b2_ref[...]).astype(o_ref.dtype)


def _ffw_kernel_multi_direct(x_ref, w1_ref, b1_ref, w2_ref, b2_ref, o_ref):
    """Hidden dim chunked, f32 output: accumulate directly into resident o_ref."""
    k = pl.program_id(1)
    xb = x_ref[...].astype(jnp.bfloat16)
    h = jnp.dot(xb, w1_ref[...], preferred_element_type=jnp.float32)
    h = jnp.maximum(h + b1_ref[...], 0.0)
    contrib = jnp.dot(h.astype(w2_ref.dtype), w2_ref[...],
                      preferred_element_type=jnp.float32)

    @pl.when(k == 0)
    def _():
        o_ref[...] = contrib + b2_ref[...]       # init folded into first step

    @pl.when(k != 0)
    def _():
        o_ref[...] = o_ref[...] + contrib


def _ffw_kernel_multi_scratch(x_ref, w1_ref, b1_ref, w2_ref, b2_ref, o_ref,
                              acc_ref):
    """Hidden dim chunked, non-f32 output: f32 scratch accumulator + cast."""
    k = pl.program_id(1)
    xb = x_ref[...].astype(jnp.bfloat16)
    h = jnp.dot(xb, w1_ref[...], preferred_element_type=jnp.float32)
    h = jnp.maximum(h + b1_ref[...], 0.0)
    contrib = jnp.dot(h.astype(w2_ref.dtype), w2_ref[...],
                      preferred_element_type=jnp.float32)

    @pl.when(k == 0)
    def _():
        acc_ref[...] = contrib + b2_ref[...]

    @pl.when(k != 0)
    def _():
        acc_ref[...] += contrib

    @pl.when(k == pl.num_programs(1) - 1)
    def _():
        o_ref[...] = acc_ref[...].astype(o_ref.dtype)


# --------------------------------------------------------------------------- #
# Tiling helpers
# --------------------------------------------------------------------------- #
def _round_up(x, n):
    return ((x + n - 1) // n) * n


def _cdiv(a, b):
    return -(-a // b)


def _tpu_generation():
    """Best-effort (vmem_capacity_bytes, tensorcores_per_chip, mxu_width)."""
    vmem_cap = 64 * 1024 * 1024          # conservative default (v7x per-TC)
    try:
        info = pltpu.get_tpu_info()
        cap = getattr(info, "vmem_capacity_bytes", None)
        if cap:
            vmem_cap = int(cap)
    except Exception:
        pass
    # v7x: 64 MiB VMEM per TensorCore, 2 TCs per chip; v5e/v6e: 128 MiB, 1 TC.
    n_tc = 2 if vmem_cap <= 64 * 1024 * 1024 else 1
    mxu = 256                            # v6e / v7x: 2x256x256 MXU
    try:
        kind = jax.devices()[0].device_kind.lower()
        if any(t in kind for t in ("v2", "v3", "v4", "v5")):
            mxu = 128                    # 128-wide MXU generations (incl. v5e)
    except Exception:
        pass
    return vmem_cap, n_tc, mxu


def _vmem_bytes(tm, th, n_in_p, n_out_p, x_itemsize, out_itemsize):
    """Rough per-step VMEM footprint (double-buffer multipliers included)."""
    bf2, f4 = 2, 4
    x_t = 2 * tm * n_in_p * x_itemsize        # x tile in its HBM dtype
    x_b = tm * n_in_p * bf2                   # in-kernel bf16 cast of x
    w1_t = 2 * n_in_p * th * bf2              # bf16 W1 chunk, double buffered
    b1_t = 2 * th * f4
    w2_t = 2 * th * n_out_p * bf2             # bf16 W2 chunk, double buffered
    b2_t = 2 * n_out_p * f4
    o_t = 2 * tm * n_out_p * max(out_itemsize, f4)
    acc = tm * n_out_p * f4                   # accumulator (scratch or resident)
    h_t = tm * th * (f4 + bf2)                # f32 hidden + bf16 copy
    return x_t + x_b + w1_t + b1_t + w2_t + b2_t + o_t + acc + h_t


def _select_tiles(m, n_in_p, n_hidden_p, n_out_p, vmem_cap, n_tc, mxu,
                  x_itemsize, out_itemsize):
    """Pick (tm, th). Prefer th == n_hidden_p (weights fetched once), then the
    largest tm that fits this generation's VMEM budget."""
    small_vmem = vmem_cap <= 64 * 1024 * 1024
    frac = 0.55 if small_vmem else 0.72       # 128 MiB parts can use more
    budget = int(vmem_cap * frac)

    def fits(tm, th):
        return _vmem_bytes(tm, th, n_in_p, n_out_p,
                           x_itemsize, out_itemsize) <= budget

    m_align = _round_up(max(m, 1), 8)
    # Split rows only on 2-TC chips (v7x), and only when each half still
    # fills the MXU; on single-TC chips halving tm just re-streams weights.
    if n_tc >= 2 and m_align >= 2 * mxu:
        tm_cap = max(mxu, (m_align // 2 // 8) * 8)
    else:
        tm_cap = m_align

    tm_cands = []
    for c in (2048, 1024, 512, 256, 128, 64, 32, 16, 8):
        t = min(c, tm_cap)
        if t not in tm_cands:
            tm_cands.append(t)

    tm_th = None
    # Pass 1: whole hidden dim resident -> K == 1, weights DMA'd exactly once.
    for tm in tm_cands:
        if fits(tm, n_hidden_p):
            tm_th = (tm, n_hidden_p)
            break
    if tm_th is None:
        # Pass 2: chunk the hidden dim; keep tm as large as possible so the
        # per-row-tile weight re-stream stays above the MXU-bound threshold.
        th_cands = [c for c in (4096, 2048, 1024, 512, 256, 128)
                    if c < n_hidden_p and n_hidden_p % c == 0]
        if not th_cands:
            th_cands = [min(128, n_hidden_p)]
        for tm in tm_cands:
            for th in th_cands:
                if fits(tm, th):
                    tm_th = (tm, th)
                    break
            if tm_th is not None:
                break
    if tm_th is None:
        tm_th = (min(8, m_align), min(128, n_hidden_p))

    tm, th = tm_th
    # v7x: keep the row-tile count even so both TensorCores get balanced work.
    if n_tc >= 2:
        n_tiles = _cdiv(m_align, tm)
        if n_tiles > 1 and n_tiles % 2 == 1:
            tm_even = _round_up(_cdiv(m_align, n_tiles + 1), 8)
            if _cdiv(m_align, tm_even) % 2 == 0:
                tm = tm_even            # smaller tm always still fits budget
    return tm, th


# --------------------------------------------------------------------------- #
# Parameter preparation (one-time cast + lane-dense padding)
# --------------------------------------------------------------------------- #
def prepare_feedforward_params(w1, b1, w2, b2):
    """Cast weights to bf16 / biases to f32 and pad feature dims to multiples
    of 128 ONCE, so per-call wrapper work never re-reads the weight matrices."""
    n_in, n_hidden = w1.shape
    n_out = w2.shape[1]
    n_in_p = _round_up(n_in, 128)
    n_hidden_p = _round_up(n_hidden, 128)
    n_out_p = _round_up(n_out, 128)
    # Zero padding is exact: padded hidden units see zero weight/bias
    # -> relu(0) = 0 -> zero contribution; padded output cols are sliced off.
    w1b = jnp.pad(w1.astype(jnp.bfloat16),
                  ((0, n_in_p - n_in), (0, n_hidden_p - n_hidden)))
    w2b = jnp.pad(w2.astype(jnp.bfloat16),
                  ((0, n_hidden_p - n_hidden), (0, n_out_p - n_out)))
    b1p = jnp.pad(b1.astype(jnp.float32).reshape(1, n_hidden),
                  ((0, 0), (0, n_hidden_p - n_hidden)))
    b2p = jnp.pad(b2.astype(jnp.float32).reshape(1, n_out),
                  ((0, 0), (0, n_out_p - n_out)))
    return {"w1": w1b, "b1": b1p, "w2": w2b, "b2": b2p,
            "n_in": n_in, "n_hidden": n_hidden, "n_out": n_out}


# --------------------------------------------------------------------------- #
# Wrapper
# --------------------------------------------------------------------------- #
def feedforward_pallas(x, params, *, tm=None, th=None):
    """x: (..., n_in) -> (..., n_out). params from prepare_feedforward_params."""
    w1b, b1p, w2b, b2p = params["w1"], params["b1"], params["w2"], params["b2"]
    n_in, n_out = params["n_in"], params["n_out"]
    n_in_p, n_hidden_p = w1b.shape
    n_out_p = w2b.shape[1]

    orig_shape = x.shape
    assert orig_shape[-1] == n_in, (orig_shape, n_in)
    out_dtype = x.dtype
    x2d = x.reshape(-1, n_in)
    m = x2d.shape[0]
    x_itemsize = jnp.dtype(x2d.dtype).itemsize
    out_itemsize = jnp.dtype(out_dtype).itemsize

    vmem_cap, n_tc, mxu = _tpu_generation()
    tm_sel, th_sel = _select_tiles(m, n_in_p, n_hidden_p, n_out_p,
                                   vmem_cap, n_tc, mxu, x_itemsize, out_itemsize)
    if tm is None:
        tm = tm_sel
    if th is None:
        th = th_sel
    assert n_hidden_p % th == 0, (n_hidden_p, th)
    m_pad = _round_up(max(m, 1), tm)

    # x stays in its original dtype (cast to bf16 inside the kernel); pad only
    # if shapes actually require it.
    if m_pad != m or n_in_p != n_in:
        x2d = jnp.pad(x2d, ((0, m_pad - m), (0, n_in_p - n_in)))

    kt = n_hidden_p // th
    n_row = m_pad // tm

    flops = 2 * m_pad * n_hidden_p * (n_in_p + n_out_p)
    weight_bytes = (w1b.size + w2b.size) * 2
    weight_fetches = 1 if kt == 1 else n_row
    bytes_accessed = (x2d.size * x_itemsize
                      + weight_fetches * weight_bytes
                      + (b1p.size + b2p.size) * 4
                      + m_pad * n_out_p * out_itemsize)

    need = _vmem_bytes(tm, th, n_in_p, n_out_p, x_itemsize, out_itemsize)
    vmem_limit = int(min(0.92 * vmem_cap,
                         max(1.35 * need, 32 * 1024 * 1024)))

    if kt == 1:
        # Hidden dim fully resident: weights fetched from HBM exactly once.
        kernel = _ffw_kernel_single
        grid_spec = pltpu.PrefetchScalarGridSpec(
            num_scalar_prefetch=0,
            grid=(n_row,),
            in_specs=[
                pl.BlockSpec((tm, n_in_p), lambda i: (i, 0)),            # x
                pl.BlockSpec((n_in_p, n_hidden_p), lambda i: (0, 0)),    # W1
                pl.BlockSpec((1, n_hidden_p), lambda i: (0, 0)),         # b1
                pl.BlockSpec((n_hidden_p, n_out_p), lambda i: (0, 0)),   # W2
                pl.BlockSpec((1, n_out_p), lambda i: (0, 0)),            # b2
            ],
            out_specs=pl.BlockSpec((tm, n_out_p), lambda i: (i, 0)),
        )
        dims = ("parallel",)
    else:
        in_specs = [
            pl.BlockSpec((tm, n_in_p), lambda i, k: (i, 0)),      # x tile
            pl.BlockSpec((n_in_p, th), lambda i, k: (0, k)),      # W1 chunk
            pl.BlockSpec((1, th), lambda i, k: (0, k)),           # b1 chunk
            pl.BlockSpec((th, n_out_p), lambda i, k: (k, 0)),     # W2 chunk
            pl.BlockSpec((1, n_out_p), lambda i, k: (0, 0)),      # b2
        ]
        out_spec = pl.BlockSpec((tm, n_out_p), lambda i, k: (i, 0))
        if out_dtype == jnp.float32:
            # f32 output block is resident across k -> accumulate in place.
            kernel = _ffw_kernel_multi_direct
            scratch = []
        else:
            kernel = _ffw_kernel_multi_scratch
            scratch = [pltpu.VMEM((tm, n_out_p), jnp.float32)]
        grid_spec = pltpu.PrefetchScalarGridSpec(
            num_scalar_prefetch=0,
            grid=(n_row, kt),
            in_specs=in_specs,
            out_specs=out_spec,
            scratch_shapes=scratch,
        )
        dims = ("parallel", "arbitrary")

    out = pl.pallas_call(
        kernel,
        out_shape=jax.ShapeDtypeStruct((m_pad, n_out_p), out_dtype),
        grid_spec=grid_spec,
        compiler_params=pltpu.CompilerParams(
            dimension_semantics=dims,
            vmem_limit_bytes=vmem_limit,
        ),
        cost_estimate=pl.CostEstimate(
            flops=int(flops), transcendentals=0,
            bytes_accessed=int(bytes_accessed)),
    )(x2d, w1b, b1p, w2b, b2p)

    out = out[:m, :n_out]
    return out.reshape(*orig_shape[:-1], n_out)


def feedforward_pallas_raw(x, w1, b1, w2, b2, **kw):
    """Convenience: prepares (casts/pads) params on every call."""
    return feedforward_pallas(x, prepare_feedforward_params(w1, b1, w2, b2), **kw)


# --------------------------------------------------------------------------- #
# Params / reference
# --------------------------------------------------------------------------- #
def init_feedforward_params(key, n_input, n_output=None, dtype=jnp.float32):
    """Deterministic init matching the nn.Linear shapes (stored transposed)."""
    if not n_output:
        n_output = n_input
    n_hidden = 4 * n_input
    k1, k2, k3, k4 = jax.random.split(key, 4)
    # PyTorch Linear default init: U(-1/sqrt(fan_in), 1/sqrt(fan_in))
    bound1 = 1.0 / jnp.sqrt(n_input)
    bound2 = 1.0 / jnp.sqrt(n_hidden)
    w1 = jax.random.uniform(k1, (n_input, n_hidden), dtype, -bound1, bound1)
    b1 = jax.random.uniform(k2, (n_hidden,), dtype, -bound1, bound1)
    w2 = jax.random.uniform(k3, (n_hidden, n_output), dtype, -bound2, bound2)
    b2 = jax.random.uniform(k4, (n_output,), dtype, -bound2, bound2)
    return w1, b1, w2, b2


def feedforward_ref(x, w1, b1, w2, b2):
    """Pure-f32 reference (dropout == identity at inference)."""
    h = jnp.maximum(x @ w1 + b1, 0.0)
    return h @ w2 + b2


# --------------------------------------------------------------------------- #
# Demo / self-test
# --------------------------------------------------------------------------- #
if __name__ == "__main__":
    key = jax.random.PRNGKey(0)
    batch, seq, n_input = 2, 8, 32
    n_output = n_input                       # default: n_output = n_input
    dropout_p = 0.1                          # identity at inference

    kx, kp = jax.random.split(key)
    x = jax.random.normal(kx, (batch, seq, n_input), jnp.float32)
    w1, b1, w2, b2 = init_feedforward_params(kp, n_input, n_output)

    # One-time weight preparation (cast + pad), then the fused kernel.
    params = prepare_feedforward_params(w1, b1, w2, b2)
    y = feedforward_pallas(x, params)
    y = jax.block_until_ready(y)

    y_ref = feedforward_ref(x, w1, b1, w2, b2)
    assert y.shape == (batch, seq, n_output), y.shape
    # bf16 operands / f32 accumulation -> loosened tolerance vs f32 reference.
    max_err = float(jnp.max(jnp.abs(y - y_ref)))
    assert jnp.allclose(y, y_ref, atol=2e-2, rtol=2e-2), max_err

    print("KERNEL_OK")
</pallas_src>

<mosaic_0001>
module attributes {stable_mosaic.version = 11 : i64} {
  func.func @_ffw_kernel_single(%arg0: i32, %arg1: memref<16x128xf32, #tpu.memory_space<vmem>>, %arg2: memref<128x128xbf16, #tpu.memory_space<vmem>>, %arg3: memref<1x128xf32, #tpu.memory_space<vmem>>, %arg4: memref<128x128xbf16, #tpu.memory_space<vmem>>, %arg5: memref<1x128xf32, #tpu.memory_space<vmem>>, %arg6: memref<16x128xf32, #tpu.memory_space<vmem>>) attributes {dimension_semantics = [#tpu.dimension_semantics<parallel>], iteration_bounds = array<i64: 1>, scalar_prefetch = 0 : i64, scratch_operands = 0 : i64, tpu.core_type = #tpu.core_type<tc>, window_params = [{transform_indices = @transform_0, window_bounds = array<i64: 16, 128>}, {pipeline_mode = #tpu.pipeline_mode<synchronous>, transform_indices = @transform_1, window_bounds = array<i64: 128, 128>}, {pipeline_mode = #tpu.pipeline_mode<synchronous>, transform_indices = @transform_2, window_bounds = array<i64: 1, 128>}, {pipeline_mode = #tpu.pipeline_mode<synchronous>, transform_indices = @transform_3, window_bounds = array<i64: 128, 128>}, {pipeline_mode = #tpu.pipeline_mode<synchronous>, transform_indices = @transform_4, window_bounds = array<i64: 1, 128>}, {transform_indices = @transform_5, window_bounds = array<i64: 16, 128>}]} {
    %c0 = arith.constant 0 : index
    %c0_0 = arith.constant 0 : index
    %0 = vector.load %arg1[%c0, %c0_0] : memref<16x128xf32, #tpu.memory_space<vmem>>, vector<16x128xf32>
    %1 = arith.truncf %0 : vector<16x128xf32> to vector<16x128xbf16>
    %c0_1 = arith.constant 0 : index
    %c0_2 = arith.constant 0 : index
    %2 = vector.load %arg2[%c0_1, %c0_2] : memref<128x128xbf16, #tpu.memory_space<vmem>>, vector<128x128xbf16>
    %cst = arith.constant dense<0.000000e+00> : vector<16x128xf32>
    %3 = tpu.matmul %1, %2, %cst {dimension_numbers = #tpu.dot_dimension_numbers<[1], [0], [0], [1], [0, 0, 1, 1], [], []>} : vector<16x128xbf16>, vector<128x128xbf16>, vector<16x128xf32> -> vector<16x128xf32>
    %c0_3 = arith.constant 0 : index
    %c0_4 = arith.constant 0 : index
    %4 = vector.load %arg3[%c0_3, %c0_4] : memref<1x128xf32, #tpu.memory_space<vmem>>, vector<1x128xf32>
    %5 = vector.broadcast %4 : vector<1x128xf32> to vector<16x128xf32>
    %6 = arith.addf %3, %5 : vector<16x128xf32>
    %cst_5 = arith.constant 0.000000e+00 : f32
    %7 = vector.broadcast %cst_5 : f32 to vector<16x128xf32>
    %8 = arith.maximumf %6, %7 : vector<16x128xf32>
    %9 = arith.truncf %8 : vector<16x128xf32> to vector<16x128xbf16>
    %c0_6 = arith.constant 0 : index
    %c0_7 = arith.constant 0 : index
    %10 = vector.load %arg4[%c0_6, %c0_7] : memref<128x128xbf16, #tpu.memory_space<vmem>>, vector<128x128xbf16>
    %cst_8 = arith.constant dense<0.000000e+00> : vector<16x128xf32>
    %11 = tpu.matmul %9, %10, %cst_8 {dimension_numbers = #tpu.dot_dimension_numbers<[1], [0], [0], [1], [0, 0, 1, 1], [], []>} : vector<16x128xbf16>, vector<128x128xbf16>, vector<16x128xf32> -> vector<16x128xf32>
    %c0_9 = arith.constant 0 : index
    %c0_10 = arith.constant 0 : index
    %12 = vector.load %arg5[%c0_9, %c0_10] : memref<1x128xf32, #tpu.memory_space<vmem>>, vector<1x128xf32>
    %13 = vector.broadcast %12 : vector<1x128xf32> to vector<16x128xf32>
    %14 = arith.addf %11, %13 : vector<16x128xf32>
    %c0_11 = arith.constant 0 : index
    %c0_12 = arith.constant 0 : index
    %15 = vector.load %arg6[%c0_11, %c0_12] : memref<16x128xf32, #tpu.memory_space<vmem>>, vector<16x128xf32>
    tpu.vector_store %arg6[%c0_11, %c0_12], %14 {strides = array<i32>} : memref<16x128xf32, #tpu.memory_space<vmem>>, vector<16x128xf32>,
    return
  }
  func.func @transform_0(%arg0: i32) -> (i32, i32) {
    %c0_i32 = arith.constant 0 : i32
    %c0_i32_0 = arith.constant 0 : i32
    return %arg0, %c0_i32 : i32, i32
  }
  func.func @transform_1(%arg0: i32) -> (i32, i32) {
    %c0_i32 = arith.constant 0 : i32
    %c0_i32_0 = arith.constant 0 : i32
    %c0_i32_1 = arith.constant 0 : i32
    return %c0_i32, %c0_i32_0 : i32, i32
  }
  func.func @transform_2(%arg0: i32) -> (i32, i32) {
    %c0_i32 = arith.constant 0 : i32
    %c0_i32_0 = arith.constant 0 : i32
    %c0_i32_1 = arith.constant 0 : i32
    return %c0_i32, %c0_i32_0 : i32, i32
  }
  func.func @transform_3(%arg0: i32) -> (i32, i32) {
    %c0_i32 = arith.constant 0 : i32
    %c0_i32_0 = arith.constant 0 : i32
    %c0_i32_1 = arith.constant 0 : i32
    return %c0_i32, %c0_i32_0 : i32, i32
  }
  func.func @transform_4(%arg0: i32) -> (i32, i32) {
    %c0_i32 = arith.constant 0 : i32
    %c0_i32_0 = arith.constant 0 : i32
    %c0_i32_1 = arith.constant 0 : i32
    return %c0_i32, %c0_i32_0 : i32, i32
  }
  func.func @transform_5(%arg0: i32) -> (i32, i32) {
    %c0_i32 = arith.constant 0 : i32
    %c0_i32_0 = arith.constant 0 : i32
    return %arg0, %c0_i32 : i32, i32
  }
}

</mosaic_0001>

<llo_original>
// kernel: tpu_custom_call.1
$region0: #{tpu_custom_call.1}
  #allocation0 [shape = 'u32[]', space=smem, size = 0x4, offset = 0x4, fixed_abs, tag = 'smem constant byte address 0x4 - core index']
  #allocation1 [shape = 'u32[144,128]{1,0:T(1,128)}', space=vmem, size = 0x12000, scoped, tag = 'internal scratch']
  %s0 = inlined_call_operand.hbm [shape: f32[16,128], index: 0, kind: input, shape index: {}]
  %s1 = inlined_call_operand.hbm [shape: bf16[128,128], index: 1, kind: input, shape index: {}]
  %s2 = inlined_call_operand.vmem [shape: f32[1,128], index: 2, kind: input, shape index: {}]
  %s3 = inlined_call_operand.hbm [shape: bf16[128,128], index: 3, kind: input, shape index: {}]
  %s4 = inlined_call_operand.vmem [shape: f32[1,128], index: 4, kind: input, shape index: {}]
  %s5 = inlined_call_operand.hbm [shape: f32[16,128], index: 5, kind: output, shape index: {}]
  %s6 = sld [smem:[#allocation0]]
  $region42: #{tpu_custom_call.1} parent=0
    _
  %s8 = ssub.s32 1, %s6
  %s9 = scalar_select 0, %s8, %s6
  $region1: #{tpu_custom_call.1} parent=0
    #allocation2 [shape = 'u8[8192]{0}', space=vmem, size = 0x2000, scoped, tag = 'input window, operand 0, single buffered']
    #allocation3 [shape = 's32[1]{0}', space=sflag, size = 0x4, scoped, tag = 'scoped memory for tpu_custom_call.1']
    #allocation4 [shape = 's32[1]{0}', space=sflag, size = 0x4, scoped, tag = 'scoped memory for tpu_custom_call.1']
    #allocation5 [shape = 'u8[32768]{0}', space=vmem, size = 0x8000, scoped, tag = 'input window, operand 1, single buffered']
    #allocation6 [shape = 's32[1]{0}', space=sflag, size = 0x4, scoped, tag = 'scoped memory for tpu_custom_call.1']
    #allocation7 [shape = 'u8[32768]{0}', space=vmem, size = 0x8000, scoped, tag = 'input window, operand 3, single buffered']
    #allocation8 [shape = 'u8[8192]{0}', space=vmem, size = 0x2000, scoped, tag = 'output window, operand 0, single buffered']
    %10 = vsyncpa [#allocation3], 0
    %11 = vsyncpa [#allocation6], 0
    %12 = vsyncpa [#allocation4], 0
    // Predicated region
    $region2: #{tpu_custom_call.1} parent=1 // pred_check
      _
    $region3: #{tpu_custom_call.1} parent=1 // pred_check_branch
      %14 = sbr.rel (0) target = $region5
    $region4: #{tpu_custom_call.1} parent=1 // pred_region
      %s16 = ssub.s32 256, 256
      %17 = vsyncadd [#allocation3], %s16
      %s18 = sshll.u32 [#allocation2], 4
      %s19 = int_to_ptr.vmem [resolvable:$true] %s18
      %24 = dma.hbm_to_vmem [thread:$0]  %s0, 256, %s19, [#allocation3], 128, 128, 8
    $region5: #{tpu_custom_call.1} parent=1 // pred_fallthru
      _
    // Predicated region
    $region6: #{tpu_custom_call.1} parent=1 // pred_check
      _
    $region7: #{tpu_custom_call.1} parent=1 // pred_check_branch
      %26 = sbr.rel (0) target = $region9
    $region8: #{tpu_custom_call.1} parent=1 // pred_region
      %s28 = ssub.s32 1024, 1024
      %29 = vsyncadd [#allocation6], %s28
      %s30 = sshll.u32 [#allocation5], 4
      %s31 = int_to_ptr.vmem [resolvable:$true] %s30
      %36 = dma.hbm_to_vmem [thread:$0]  %s1, 1024, %s31, [#allocation6], 64, 64, 4
    $region9: #{tpu_custom_call.1} parent=1 // pred_fallthru
      _
    // Predicated region
    $region10: #{tpu_custom_call.1} parent=1 // pred_check
      _
    $region11: #{tpu_custom_call.1} parent=1 // pred_check_branch
      %38 = sbr.rel (0) target = $region13
    $region12: #{tpu_custom_call.1} parent=1 // pred_region
      _
    $region13: #{tpu_custom_call.1} parent=1 // pred_fallthru
      _
    // Predicated region
    $region14: #{tpu_custom_call.1} parent=1 // pred_check
      _
    $region15: #{tpu_custom_call.1} parent=1 // pred_check_branch
      %40 = sbr.rel (0) target = $region17
    $region16: #{tpu_custom_call.1} parent=1 // pred_region
      %s42 = ssub.s32 1024, 1024
      %43 = vsyncadd [#allocation6], %s42
      %s44 = sshll.u32 [#allocation7], 4
      %s45 = int_to_ptr.vmem [resolvable:$true] %s44
      %50 = dma.hbm_to_vmem [thread:$0]  %s3, 1024, %s45, [#allocation6], 64, 64, 4
    $region17: #{tpu_custom_call.1} parent=1 // pred_fallthru
      _
    // Predicated region
    $region18: #{tpu_custom_call.1} parent=1 // pred_check
      _
    $region19: #{tpu_custom_call.1} parent=1 // pred_check_branch
      %52 = sbr.rel (0) target = $region21
    $region20: #{tpu_custom_call.1} parent=1 // pred_region
      _
    $region21: #{tpu_custom_call.1} parent=1 // pred_fallthru
      _
    // Predicated region
    $region22: #{tpu_custom_call.1} parent=1 // pred_check
      _
    $region23: #{tpu_custom_call.1} parent=1 // pred_check_branch
      %54 = sbr.rel (0) target = $region25
    $region24: #{tpu_custom_call.1} parent=1 // pred_region
      %55 = dma.done [#allocation3], 256
    $region25: #{tpu_custom_call.1} parent=1 // pred_fallthru
      _
    // Predicated region
    $region26: #{tpu_custom_call.1} parent=1 // pred_check
      _
    $region27: #{tpu_custom_call.1} parent=1 // pred_check_branch
      %57 = sbr.rel (0) target = $region29
    $region28: #{tpu_custom_call.1} parent=1 // pred_region
      %58 = dma.done [#allocation6], 1024
    $region29: #{tpu_custom_call.1} parent=1 // pred_fallthru
      _
    // Predicated region
    $region30: #{tpu_custom_call.1} parent=1 // pred_check
      _
    $region31: #{tpu_custom_call.1} parent=1 // pred_check_branch
      %60 = sbr.rel (0) target = $region33
    $region32: #{tpu_custom_call.1} parent=1 // pred_region
      %61 = dma.done [#allocation6], 1024
    $region33: #{tpu_custom_call.1} parent=1 // pred_fallthru
      _
    %v63 = vld [vmem:[#allocation2] sm:$0xff]
    %v64 = vld [vmem:[#allocation2 + $0x8] sm:$0xff]
    %v65 = vpack.c.bf16 %v64, %v63
    %v66 = vld [vmem:[#allocation5] sm:$0xf]
    %v67 = vld [vmem:[#allocation5 + $0x4] sm:$0xf]
    %v68 = vld [vmem:[#allocation5 + $0x8] sm:$0xf]
    %v69 = vld [vmem:[#allocation5 + $0xc] sm:$0xf]
    %v70 = vld [vmem:[#allocation5 + $0x10] sm:$0xf]
    %v71 = vld [vmem:[#allocation5 + $0x14] sm:$0xf]
    %v72 = vld [vmem:[#allocation5 + $0x18] sm:$0xf]
    %v73 = vld [vmem:[#allocation5 + $0x1c] sm:$0xf]
    %v74 = vld [vmem:[#allocation5 + $0x20] sm:$0xf]
    %v75 = vld [vmem:[#allocation5 + $0x24] sm:$0xf]
    %v76 = vld [vmem:[#allocation5 + $0x28] sm:$0xf]
    %v77 = vld [vmem:[#allocation5 + $0x2c] sm:$0xf]
    %v78 = vld [vmem:[#allocation5 + $0x30] sm:$0xf]
    %v79 = vld [vmem:[#allocation5 + $0x34] sm:$0xf]
    %v80 = vld [vmem:[#allocation5 + $0x38] sm:$0xf]
    %v81 = vld [vmem:[#allocation5 + $0x3c] sm:$0xf]
    %v82 = vld [vmem:[%s2] sm:$0x1]
    %v84 = vlaneseq
    %v85 = vshrl.u32 %v84, 7
    %v86 = vsub.s32 0, %v85
    %v87 = vrot.slane %v82, %v86
    %v105 = vunpack.c.l.b16 %v66
    %v106 = vunpack.c.l.b16 %v67
    %v107 = vunpack.c.l.b16 %v68
    %v108 = vunpack.c.l.b16 %v69
    %v109 = vunpack.c.l.b16 %v70
    %v110 = vunpack.c.l.b16 %v71
    %v111 = vunpack.c.l.b16 %v72
    %v112 = vunpack.c.l.b16 %v73
    %v113 = vunpack.c.l.b16 %v74
    %v114 = vunpack.c.l.b16 %v75
    %v115 = vunpack.c.l.b16 %v76
    %v116 = vunpack.c.l.b16 %v77
    %v117 = vunpack.c.l.b16 %v78
    %v118 = vunpack.c.l.b16 %v79
    %v119 = vunpack.c.l.b16 %v80
    %v120 = vunpack.c.l.b16 %v81
    %v121 = vpack.c.b16 %v106, %v105
    %v122 = vpack.c.b16 %v108, %v107
    %v123 = vpack.c.b16 %v110, %v109
    %v124 = vpack.c.b16 %v112, %v111
    %v125 = vpack.c.b16 %v114, %v113
    %v126 = vpack.c.b16 %v116, %v115
    %v127 = vpack.c.b16 %v118, %v117
    %v128 = vpack.c.b16 %v120, %v119
    %137 = vmatprep.subr.bf16.mxu0 0
    %138 = vmatpush1.bf16.msra.mxu0 %v128
    %139 = vmatprep.subr.bf16.mxu0 0
    %140 = vmatpush1.bf16.msra.mxu0 %v127
    %141 = vmatprep.subr.bf16.mxu0 0
    %142 = vmatpush1.bf16.msra.mxu0 %v126
    %143 = vmatprep.subr.bf16.mxu0 0
    %144 = vmatpush1.bf16.msra.mxu0 %v125
    %145 = vmatprep.subr.bf16.mxu0 0
    %146 = vmatpush1.bf16.msra.mxu0 %v124
    %147 = vmatprep.subr.bf16.mxu0 0
    %148 = vmatpush1.bf16.msra.mxu0 %v123
    %149 = vmatprep.subr.bf16.mxu0 0
    %150 = vmatpush1.bf16.msra.mxu0 %v122
    %151 = vmatprep.subr.bf16.mxu0 0
    %152 = vmatpush1.bf16.msra.mxu0 %v121
    %153 = vmatprep.subr.bf16.mxu0 0
    %154 = vmatpush2.bf16.msra.mxu0 0
    %155 = vmatprep.subr.bf16.mxu0 0
    %156 = vmatpush2.bf16.msra.mxu0 0
    %157 = vmatprep.subr.bf16.mxu0 0
    %158 = vmatpush2.bf16.msra.mxu0 0
    %159 = vmatprep.subr.bf16.mxu0 0
    %160 = vmatpush2.bf16.msra.mxu0 0
    %161 = vmatprep.subr.bf16.mxu0 0
    %162 = vmatpush2.bf16.msra.mxu0 0
    %163 = vmatprep.subr.bf16.mxu0 0
    %164 = vmatpush2.bf16.msra.mxu0 0
    %165 = vmatprep.subr.bf16.mxu0 0
    %166 = vmatpush2.bf16.msra.mxu0 0
    %167 = vmatprep.subr.bf16.mxu0 0
    %168 = vmatpush2.bf16.msra.mxu0 0
    %169 = vmatprep.mubr.bf16.mxu0 0
    %170 = vmatmul.mubr.bf16.gmra.mxu0 %v65
    %v171 = vpop.f32.mrf.mxu0
    %v172 = vadd.f32 %v87, %v171
    %v173 = vpop.f32.mrf.mxu0
    %v174 = vpop.f32.mrf.mxu0
    %v175 = vadd.f32 %v87, %v174
    %v176 = vpop.f32.mrf.mxu0
    %177 = vdwg.mxu0
    %v178 = vmax.f32 %v172, 0.0
    %v179 = vmax.f32 %v175, 0.0
    %v180 = vpack.c.bf16 %v179, %v178
    %v181 = vld [vmem:[#allocation7] sm:$0xf]
    %v182 = vld [vmem:[#allocation7 + $0x4] sm:$0xf]
    %v183 = vld [vmem:[#allocation7 + $0x8] sm:$0xf]
    %v184 = vld [vmem:[#allocation7 + $0xc] sm:$0xf]
    %v185 = vld [vmem:[#allocation7 + $0x10] sm:$0xf]
    %v186 = vld [vmem:[#allocation7 + $0x14] sm:$0xf]
    %v187 = vld [vmem:[#allocation7 + $0x18] sm:$0xf]
    %v188 = vld [vmem:[#allocation7 + $0x1c] sm:$0xf]
    %v189 = vld [vmem:[#allocation7 + $0x20] sm:$0xf]
    %v190 = vld [vmem:[#allocation7 + $0x24] sm:$0xf]
    %v191 = vld [vmem:[#allocation7 + $0x28] sm:$0xf]
    %v192 = vld [vmem:[#allocation7 + $0x2c] sm:$0xf]
    %v193 = vld [vmem:[#allocation7 + $0x30] sm:$0xf]
    %v194 = vld [vmem:[#allocation7 + $0x34] sm:$0xf]
    %v195 = vld [vmem:[#allocation7 + $0x38] sm:$0xf]
    %v196 = vld [vmem:[#allocation7 + $0x3c] sm:$0xf]
    %v197 = vld [vmem:[%s4] sm:$0x1]
    %v199 = vlaneseq
    %v200 = vshrl.u32 %v199, 7
    %v201 = vsub.s32 0, %v200
    %v202 = vrot.slane %v197, %v201
    %v220 = vunpack.c.l.b16 %v181
    %v221 = vunpack.c.l.b16 %v182
    %v222 = vunpack.c.l.b16 %v183
    %v223 = vunpack.c.l.b16 %v184
    %v224 = vunpack.c.l.b16 %v185
    %v225 = vunpack.c.l.b16 %v186
    %v226 = vunpack.c.l.b16 %v187
    %v227 = vunpack.c.l.b16 %v188
    %v228 = vunpack.c.l.b16 %v189
    %v229 = vunpack.c.l.b16 %v190
    %v230 = vunpack.c.l.b16 %v191
    %v231 = vunpack.c.l.b16 %v192
    %v232 = vunpack.c.l.b16 %v193
    %v233 = vunpack.c.l.b16 %v194
    %v234 = vunpack.c.l.b16 %v195
    %v235 = vunpack.c.l.b16 %v196
    %v236 = vpack.c.b16 %v221, %v220
    %v237 = vpack.c.b16 %v223, %v222
    %v238 = vpack.c.b16 %v225, %v224
    %v239 = vpack.c.b16 %v227, %v226
    %v240 = vpack.c.b16 %v229, %v228
    %v241 = vpack.c.b16 %v231, %v230
    %v242 = vpack.c.b16 %v233, %v232
    %v243 = vpack.c.b16 %v235, %v234
    %252 = vmatprep.subr.bf16.mxu0 0
    %253 = vmatpush1.bf16.msra.mxu0 %v243
    %254 = vmatprep.subr.bf16.mxu0 0
    %255 = vmatpush1.bf16.msra.mxu0 %v242
    %256 = vmatprep.subr.bf16.mxu0 0
    %257 = vmatpush1.bf16.msra.mxu0 %v241
    %258 = vmatprep.subr.bf16.mxu0 0
    %259 = vmatpush1.bf16.msra.mxu0 %v240
    %260 = vmatprep.subr.bf16.mxu0 0
    %261 = vmatpush1.bf16.msra.mxu0 %v239
    %262 = vmatprep.subr.bf16.mxu0 0
    %263 = vmatpush1.bf16.msra.mxu0 %v238
    %264 = vmatprep.subr.bf16.mxu0 0
    %265 = vmatpush1.bf16.msra.mxu0 %v237
    %266 = vmatprep.subr.bf16.mxu0 0
    %267 = vmatpush1.bf16.msra.mxu0 %v236
    %268 = vmatprep.subr.bf16.mxu0 0
    %269 = vmatpush2.bf16.msra.mxu0 0
    %270 = vmatprep.subr.bf16.mxu0 0
    %271 = vmatpush2.bf16.msra.mxu0 0
    %272 = vmatprep.subr.bf16.mxu0 0
    %273 = vmatpush2.bf16.msra.mxu0 0
    %274 = vmatprep.subr.bf16.mxu0 0
    %275 = vmatpush2.bf16.msra.mxu0 0
    %276 = vmatprep.subr.bf16.mxu0 0
    %277 = vmatpush2.bf16.msra.mxu0 0
    %278 = vmatprep.subr.bf16.mxu0 0
    %279 = vmatpush2.bf16.msra.mxu0 0
    %280 = vmatprep.subr.bf16.mxu0 0
    %281 = vmatpush2.bf16.msra.mxu0 0
    %282 = vmatprep.subr.bf16.mxu0 0
    %283 = vmatpush2.bf16.msra.mxu0 0
    %284 = vmatprep.mubr.bf16.mxu0 0
    %285 = vmatmul.mubr.bf16.gmra.mxu0 %v180
    %v286 = vpop.f32.mrf.mxu0
    %v287 = vadd.f32 %v202, %v286
    %v288 = vpop.f32.mrf.mxu0
    %v289 = vpop.f32.mrf.mxu0
    %v290 = vadd.f32 %v202, %v289
    %v291 = vpop.f32.mrf.mxu0
    %292 = vdwg.mxu0
    %293 = vst [vmem:[#allocation8] sm:$0xff] %v287
    %294 = vst [vmem:[#allocation8 + $0x8] sm:$0xff] %v290
    // Predicated region
    $region34: #{tpu_custom_call.1} parent=1 // pred_check
      _
    $region35: #{tpu_custom_call.1} parent=1 // pred_check_branch
      %296 = sbr.rel (0) target = $region37
    $region36: #{tpu_custom_call.1} parent=1 // pred_region
      %s298 = ssub.s32 256, 256
      %299 = vsyncadd [#allocation4], %s298
      %s300 = sshll.u32 [#allocation8], 4
      %s301 = int_to_ptr.vmem [resolvable:$true] %s300
      %306 = dma.vmem_to_hbm [thread:$0]  %s301, 256, %s5, [#allocation4], 128, 128, 8
    $region37: #{tpu_custom_call.1} parent=1 // pred_fallthru
      _
    // Predicated region
    $region38: #{tpu_custom_call.1} parent=1 // pred_check
      _
    $region39: #{tpu_custom_call.1} parent=1 // pred_check_branch
      %308 = sbr.rel (0) target = $region41
    $region40: #{tpu_custom_call.1} parent=1 // pred_region
      %309 = dma.done [#allocation4], 256
    $region41: #{tpu_custom_call.1} parent=1 // pred_fallthru
      _
    %310 = vsyncpa [#allocation3], 1
    %311 = vsyncpa [#allocation6], 1
    %312 = vsyncpa [#allocation4], 1

</llo_original>
